<compile_context>
chip_gen: v6e
topology: v6e:2x2x1
jax: 0.10.0
libtpu: 0.0.40
codegen_flags: <defaults>
</compile_context>

<pallas_src>
import jax
import jax.numpy as jnp
from jax.experimental import pallas as pl
from jax.experimental.pallas import tpu as pltpu

LANE = 128


def _round_up(x, m):
    return (x + m - 1) // m * m


def _slab_layout(d_in):
    """Row offsets of each weight segment inside the packed bf16 weight slab.

    Layer-1's K is d_in rounded up to 16 (bf16 sublane packing); layers 2..5
    keep full 128-row K segments (padded rows are zero) so activations stay
    128-lane dense and every slab slice is a 16-row-aligned free view.
    """
    k1 = _round_up(d_in, 16)
    seg_rows = [k1, 128, 128, 128, 128]
    offs, cur = [], 0
    for r in seg_rows:
        offs.append(cur)
        cur += r
    return offs, cur, k1


# --------------------------------------------------------------------------
# Pallas kernel: the bio_extractor MLP
#   Linear(d_in,128) -> LN(128) -> LeakyReLU
#   Linear(128,128)  -> LN(128) -> LeakyReLU -> Dropout(identity @ inference)
#   Linear(128,64)   -> LN(64)  -> LeakyReLU -> Dropout(identity)
#   Linear(64,32)    -> LN(32)  -> LeakyReLU -> Dropout(identity)
#   Linear(32,n_clusters)        (stored as round_up(n_clusters, 8) columns)
# --------------------------------------------------------------------------
def _make_mlp_kernel(k1, offs, out_pad):
    o1, o2, o3, o4, o5 = offs
    bf16 = jnp.bfloat16
    f32 = jnp.float32

    def _ln_lrelu(h, gamma, beta, inv_width, mask=None, eps=1e-5, slope=0.01):
        # LayerNorm over the valid lanes only (padded lanes of h are exactly 0),
        # centered-variance form to avoid E[h^2]-mu^2 cancellation.
        mu = jnp.sum(h, axis=-1, keepdims=True) * inv_width
        d = h - mu
        d2 = d * d
        if mask is not None:
            d2 = d2 * mask                      # drop padded lanes from the stats
        var = jnp.sum(d2, axis=-1, keepdims=True) * inv_width
        hn = d * jax.lax.rsqrt(var + eps) * gamma + beta
        # gamma/beta are zero on padded lanes -> hn stays exactly 0 there.
        return jnp.where(hn >= 0, hn, slope * hn)

    def kernel(x_ref, w_ref, v_ref, o_ref):
        x = x_ref[...]                                           # (tb, k1) bf16
        mask64 = v_ref[13:14, :]
        mask32 = v_ref[14:15, :]

        # layer 1: k1 -> 128
        h = jnp.dot(x, w_ref[o1:o1 + k1, :], preferred_element_type=f32)
        h = _ln_lrelu(h + v_ref[0:1, :], v_ref[1:2, :], v_ref[2:3, :], 1.0 / 128)

        # layer 2: 128 -> 128   (Dropout: identity at inference)
        h = jnp.dot(h.astype(bf16), w_ref[o2:o2 + 128, :],
                    preferred_element_type=f32)
        h = _ln_lrelu(h + v_ref[3:4, :], v_ref[4:5, :], v_ref[5:6, :], 1.0 / 128)

        # layer 3: 128 -> 64, computed 128-lane wide (weight cols 64.. are zero)
        h = jnp.dot(h.astype(bf16), w_ref[o3:o3 + 128, :],
                    preferred_element_type=f32)
        h = _ln_lrelu(h + v_ref[6:7, :], v_ref[7:8, :], v_ref[8:9, :],
                      1.0 / 64, mask64)

        # layer 4: 64 -> 32, computed 128-lane wide (weight rows 64.. / cols 32.. zero)
        h = jnp.dot(h.astype(bf16), w_ref[o4:o4 + 128, :],
                    preferred_element_type=f32)
        h = _ln_lrelu(h + v_ref[9:10, :], v_ref[10:11, :], v_ref[11:12, :],
                      1.0 / 32, mask32)

        # layer 5: 32 -> n_clusters, 128-wide matmul, store only valid columns
        h = jnp.dot(h.astype(bf16), w_ref[o5:o5 + 128, :],
                    preferred_element_type=f32) + v_ref[12:13, :]
        o_ref[...] = h[:, :out_pad]

    return kernel


def run_bionet_mlp(feat, wslab, vslab, n_clusters, tb=1024):
    """feat: (B, d_in) f32. Returns (B, n_clusters) f32."""
    B, d_in = feat.shape
    assert n_clusters <= LANE
    offs, total_rows, k1 = _slab_layout(d_in)
    assert wslab.shape == (total_rows, LANE)
    out_pad = _round_up(max(n_clusters, 8), 8)

    if B <= tb:
        # Small batch: split into exactly 2 grid steps so v7x's two TensorCores
        # both get work; 16-row multiple keeps bf16 sublane tiling aligned.
        tb = max(16, _round_up((B + 1) // 2, 16))
        B_pad = 2 * tb
    else:
        tb = _round_up(tb, 16)
        B_pad = _round_up(B, tb)

    # Pad batch rows and the layer-1 contraction dim to k1, and pre-cast to
    # bf16 (halves input DMA; the matmuls run in bf16 anyway).
    feat = jnp.pad(feat, ((0, B_pad - B), (0, k1 - d_in))).astype(jnp.bfloat16)

    kernel = _make_mlp_kernel(k1, offs, out_pad)

    out = pl.pallas_call(
        kernel,
        out_shape=jax.ShapeDtypeStruct((B_pad, out_pad), jnp.float32),
        grid=(B_pad // tb,),
        in_specs=[
            pl.BlockSpec((tb, k1), lambda i: (i, 0)),          # x: batch-tiled
            pl.BlockSpec(wslab.shape, lambda i: (0, 0)),       # weights: resident
            pl.BlockSpec(vslab.shape, lambda i: (0, 0)),       # bias/LN/masks
        ],
        out_specs=pl.BlockSpec((tb, out_pad), lambda i: (i, 0)),  # narrow output
        compiler_params=pltpu.CompilerParams(
            dimension_semantics=("parallel",)),
        # TODO(synk): set vmem_limit_bytes if tb is swept past ~4K rows (v5e).
    )(feat, wslab, vslab)

    return out[:B, :n_clusters]


# --------------------------------------------------------------------------
# Parameter construction (deterministic, mirrors _init_weights)
#   Linear: kaiming_normal_(mode='fan_out', relu) -> std = sqrt(2 / out_features)
#           bias = 0;  LayerNorm: gamma=1, beta=0;  Embedding: N(0, 1)
# --------------------------------------------------------------------------
def make_params(key, d_in, n_clusters, genre_size, bio_embedding_dim):
    dims = [(d_in, 128), (128, 128), (128, 64), (64, 32), (32, n_clusters)]
    keys = jax.random.split(key, len(dims) + 1)
    emb_table = jax.random.normal(keys[0], (genre_size, bio_embedding_dim),
                                  dtype=jnp.float32)
    params = []
    ln_dims = [128, 128, 64, 32]
    for i, (di, do) in enumerate(dims):
        std = (2.0 / do) ** 0.5                      # fan_out kaiming (relu gain)
        w = jax.random.normal(keys[i + 1], (di, do), dtype=jnp.float32) * std
        b = jnp.zeros((do,), dtype=jnp.float32)
        params.append(w)
        params.append(b)
        if i < 4:
            params.append(jnp.ones((ln_dims[i],), dtype=jnp.float32))   # gamma
            params.append(jnp.zeros((ln_dims[i],), dtype=jnp.float32))  # beta
    return emb_table, params


def pack_params(params, d_in, n_clusters):
    """Pack the 18 small arrays into (wslab bf16, vslab f32)."""
    offs, total_rows, _ = _slab_layout(d_in)
    w1, b1, g1, be1 = params[0:4]
    w2, b2, g2, be2 = params[4:8]
    w3, b3, g3, be3 = params[8:12]
    w4, b4, g4, be4 = params[12:16]
    w5, b5 = params[16:18]

    wslab = jnp.zeros((total_rows, LANE), dtype=jnp.float32)
    wslab = wslab.at[offs[0]:offs[0] + d_in, :128].set(w1)
    wslab = wslab.at[offs[1]:offs[1] + 128, :128].set(w2)
    wslab = wslab.at[offs[2]:offs[2] + 128, :64].set(w3)
    wslab = wslab.at[offs[3]:offs[3] + 64, :32].set(w4)
    wslab = wslab.at[offs[4]:offs[4] + 32, :n_clusters].set(w5)
    wslab = wslab.astype(jnp.bfloat16)

    lane = jnp.arange(LANE)
    vslab = jnp.zeros((16, LANE), dtype=jnp.float32)
    vslab = vslab.at[0, :128].set(b1)
    vslab = vslab.at[1, :128].set(g1)
    vslab = vslab.at[2, :128].set(be1)
    vslab = vslab.at[3, :128].set(b2)
    vslab = vslab.at[4, :128].set(g2)
    vslab = vslab.at[5, :128].set(be2)
    vslab = vslab.at[6, :64].set(b3)
    vslab = vslab.at[7, :64].set(g3)
    vslab = vslab.at[8, :64].set(be3)
    vslab = vslab.at[9, :32].set(b4)
    vslab = vslab.at[10, :32].set(g4)
    vslab = vslab.at[11, :32].set(be4)
    vslab = vslab.at[12, :n_clusters].set(b5)
    vslab = vslab.at[13].set((lane < 64).astype(jnp.float32))   # LN-64 lane mask
    vslab = vslab.at[14].set((lane < 32).astype(jnp.float32))   # LN-32 lane mask
    return wslab, vslab


# --------------------------------------------------------------------------
# Feature preprocessing (plain-JAX glue, matches BioNet.forward)
# --------------------------------------------------------------------------
def build_bio_feature(bio, emb_table, gender_size, play_freq_size, gamer_size):
    b = bio[:, 0, :]                              # squeeze(1)
    age = b[:, 0:1]                               # float
    gender = b[:, 1].astype(jnp.int32)
    freq = b[:, 2].astype(jnp.int32)
    gamer = b[:, 3].astype(jnp.int32)
    platform = b[:, 4:7]
    genre = b[:, 7].astype(jnp.int32)
    gender_oh = jax.nn.one_hot(gender, gender_size, dtype=jnp.float32)
    freq_oh = jax.nn.one_hot(freq, play_freq_size, dtype=jnp.float32)
    gamer_oh = jax.nn.one_hot(gamer, gamer_size, dtype=jnp.float32)
    genre_emb = emb_table[genre]
    # TODO(synk): the one-hot blocks could be folded into row-gathers of w1
    # (algebraic simplification); kept explicit to match the reference forward.
    return jnp.concatenate(
        [age, gender_oh, freq_oh, platform, gamer_oh, genre_emb], axis=1)


# --------------------------------------------------------------------------
# Pure-JAX f32 reference of bio_extractor (for a loose correctness gate)
# --------------------------------------------------------------------------
def bionet_ref(feat, params):
    (w1, b1, g1, be1, w2, b2, g2, be2, w3, b3, g3, be3,
     w4, b4, g4, be4, w5, b5) = params

    def ln(h, g, b, eps=1e-5):
        mu = jnp.mean(h, axis=-1, keepdims=True)
        var = jnp.mean((h - mu) ** 2, axis=-1, keepdims=True)
        return (h - mu) / jnp.sqrt(var + eps) * g + b

    def lrelu(h):
        return jnp.where(h >= 0, h, 0.01 * h)

    h = lrelu(ln(feat @ w1 + b1, g1, be1))
    h = lrelu(ln(h @ w2 + b2, g2, be2))
    h = lrelu(ln(h @ w3 + b3, g3, be3))
    h = lrelu(ln(h @ w4 + b4, g4, be4))
    return h @ w5 + b5


if __name__ == "__main__":
    # ------ config (small, consistent with the module's forward) ------
    gender_size = 2
    play_freq_size = 4
    gamer_size = 3
    genre_size = 10
    bio_embedding_dim = 8
    n_clusters = 5
    bio_total_size = (1 + gender_size + play_freq_size + gamer_size + 3
                      + bio_embedding_dim)                      # 21

    B = 8
    key = jax.random.PRNGKey(0)
    k_in, k_par = jax.random.split(key)

    # Synthetic bio tensor of shape (B, 1, 8):
    # [age, gender, freq, gamer, platform0, platform1, platform2, genre]
    ks = jax.random.split(k_in, 6)
    age = jax.random.uniform(ks[0], (B, 1), minval=18.0, maxval=60.0)
    gender = jax.random.randint(ks[1], (B, 1), 0, gender_size).astype(jnp.float32)
    freq = jax.random.randint(ks[2], (B, 1), 0, play_freq_size).astype(jnp.float32)
    gamer = jax.random.randint(ks[3], (B, 1), 0, gamer_size).astype(jnp.float32)
    platform = jax.random.uniform(ks[4], (B, 3))
    genre = jax.random.randint(ks[5], (B, 1), 0, genre_size).astype(jnp.float32)
    bio = jnp.concatenate([age, gender, freq, gamer, platform, genre], axis=1)
    bio = bio[:, None, :]                                        # (B, 1, 8)

    emb_table, params = make_params(k_par, bio_total_size, n_clusters,
                                    genre_size, bio_embedding_dim)
    wslab, vslab = pack_params(params, bio_total_size, n_clusters)

    feat = build_bio_feature(bio, emb_table, gender_size, play_freq_size,
                             gamer_size)                         # (B, 21)

    out = run_bionet_mlp(feat, wslab, vslab, n_clusters)         # (B, n_clusters)
    out = jax.block_until_ready(out)

    ref = bionet_ref(feat, params)                               # f32 reference
    assert out.shape == (B, n_clusters)
    assert out.dtype == jnp.float32
    assert bool(jnp.all(jnp.isfinite(out)))
    max_err = float(jnp.max(jnp.abs(out - ref)))
    assert max_err < 0.3, f"kernel vs f32 reference max abs err = {max_err}"
    print("KERNEL_OK")
</pallas_src>

<mosaic_0001>
module attributes {stable_mosaic.version = 11 : i64} {
  func.func @kernel(%arg0: i32, %arg1: memref<16x32xbf16, #tpu.memory_space<vmem>>, %arg2: memref<544x128xbf16, #tpu.memory_space<vmem>>, %arg3: memref<16x128xf32, #tpu.memory_space<vmem>>, %arg4: memref<16x8xf32, #tpu.memory_space<vmem>>) attributes {dimension_semantics = [#tpu.dimension_semantics<parallel>], iteration_bounds = array<i64: 2>, scalar_prefetch = 0 : i64, scratch_operands = 0 : i64, tpu.core_type = #tpu.core_type<tc>, window_params = [{transform_indices = @transform_0, window_bounds = array<i64: 16, 32>}, {pipeline_mode = #tpu.pipeline_mode<synchronous>, transform_indices = @transform_1, window_bounds = array<i64: 544, 128>}, {pipeline_mode = #tpu.pipeline_mode<synchronous>, transform_indices = @transform_2, window_bounds = array<i64: 16, 128>}, {transform_indices = @transform_3, window_bounds = array<i64: 16, 8>}]} {
    %c0 = arith.constant 0 : index
    %c0_0 = arith.constant 0 : index
    %0 = vector.load %arg1[%c0, %c0_0] : memref<16x32xbf16, #tpu.memory_space<vmem>>, vector<16x32xbf16>
    %c13 = arith.constant 13 : index
    %c0_1 = arith.constant 0 : index
    %1 = vector.load %arg3[%c13, %c0_1] : memref<16x128xf32, #tpu.memory_space<vmem>>, vector<1x128xf32>
    %c14 = arith.constant 14 : index
    %c0_2 = arith.constant 0 : index
    %2 = vector.load %arg3[%c14, %c0_2] : memref<16x128xf32, #tpu.memory_space<vmem>>, vector<1x128xf32>
    %c0_3 = arith.constant 0 : index
    %c0_4 = arith.constant 0 : index
    %3 = vector.load %arg2[%c0_3, %c0_4] : memref<544x128xbf16, #tpu.memory_space<vmem>>, vector<32x128xbf16>
    %cst = arith.constant dense<0.000000e+00> : vector<16x128xf32>
    %4 = tpu.matmul %0, %3, %cst {dimension_numbers = #tpu.dot_dimension_numbers<[1], [0], [0], [1], [0, 0, 1, 1], [], []>} : vector<16x32xbf16>, vector<32x128xbf16>, vector<16x128xf32> -> vector<16x128xf32>
    %c0_5 = arith.constant 0 : index
    %c0_6 = arith.constant 0 : index
    %5 = vector.load %arg3[%c0_5, %c0_6] : memref<16x128xf32, #tpu.memory_space<vmem>>, vector<1x128xf32>
    %6 = vector.broadcast %5 : vector<1x128xf32> to vector<16x128xf32>
    %7 = arith.addf %4, %6 : vector<16x128xf32>
    %c1 = arith.constant 1 : index
    %c0_7 = arith.constant 0 : index
    %8 = vector.load %arg3[%c1, %c0_7] : memref<16x128xf32, #tpu.memory_space<vmem>>, vector<1x128xf32>
    %c2 = arith.constant 2 : index
    %c0_8 = arith.constant 0 : index
    %9 = vector.load %arg3[%c2, %c0_8] : memref<16x128xf32, #tpu.memory_space<vmem>>, vector<1x128xf32>
    %cst_9 = arith.constant dense<0.000000e+00> : vector<16xf32>
    %10 = vector.multi_reduction <add>, %7, %cst_9 [1] : vector<16x128xf32> to vector<16xf32>
    %11 = vector.shape_cast %10 : vector<16xf32> to vector<16x1xf32>
    %cst_10 = arith.constant 7.812500e-03 : f32
    %12 = vector.broadcast %cst_10 : f32 to vector<16x1xf32>
    %13 = arith.mulf %11, %12 : vector<16x1xf32>
    %14 = vector.broadcast %13 : vector<16x1xf32> to vector<16x128xf32>
    %15 = arith.subf %7, %14 : vector<16x128xf32>
    %16 = arith.mulf %15, %15 : vector<16x128xf32>
    %cst_11 = arith.constant dense<0.000000e+00> : vector<16xf32>
    %17 = vector.multi_reduction <add>, %16, %cst_11 [1] : vector<16x128xf32> to vector<16xf32>
    %18 = vector.shape_cast %17 : vector<16xf32> to vector<16x1xf32>
    %cst_12 = arith.constant 7.812500e-03 : f32
    %19 = vector.broadcast %cst_12 : f32 to vector<16x1xf32>
    %20 = arith.mulf %18, %19 : vector<16x1xf32>
    %cst_13 = arith.constant 9.99999974E-6 : f32
    %21 = vector.broadcast %cst_13 : f32 to vector<16x1xf32>
    %22 = arith.addf %20, %21 : vector<16x1xf32>
    %23 = math.rsqrt %22 : vector<16x1xf32>
    %24 = vector.broadcast %23 : vector<16x1xf32> to vector<16x128xf32>
    %25 = arith.mulf %15, %24 : vector<16x128xf32>
    %26 = vector.broadcast %8 : vector<1x128xf32> to vector<16x128xf32>
    %27 = arith.mulf %25, %26 : vector<16x128xf32>
    %28 = vector.broadcast %9 : vector<1x128xf32> to vector<16x128xf32>
    %29 = arith.addf %27, %28 : vector<16x128xf32>
    %cst_14 = arith.constant 0.000000e+00 : f32
    %30 = vector.broadcast %cst_14 : f32 to vector<16x128xf32>
    %31 = arith.cmpf oge, %29, %30 : vector<16x128xf32>
    %cst_15 = arith.constant 0.00999999977 : f32
    %32 = vector.broadcast %cst_15 : f32 to vector<16x128xf32>
    %33 = arith.mulf %32, %29 : vector<16x128xf32>
    %34 = arith.select %31, %29, %33 : vector<16x128xi1>, vector<16x128xf32>
    %35 = arith.truncf %34 : vector<16x128xf32> to vector<16x128xbf16>
    %c32 = arith.constant 32 : index
    %c0_16 = arith.constant 0 : index
    %36 = vector.load %arg2[%c32, %c0_16] : memref<544x128xbf16, #tpu.memory_space<vmem>>, vector<128x128xbf16>
    %cst_17 = arith.constant dense<0.000000e+00> : vector<16x128xf32>
    %37 = tpu.matmul %35, %36, %cst_17 {dimension_numbers = #tpu.dot_dimension_numbers<[1], [0], [0], [1], [0, 0, 1, 1], [], []>} : vector<16x128xbf16>, vector<128x128xbf16>, vector<16x128xf32> -> vector<16x128xf32>
    %c3 = arith.constant 3 : index
    %c0_18 = arith.constant 0 : index
    %38 = vector.load %arg3[%c3, %c0_18] : memref<16x128xf32, #tpu.memory_space<vmem>>, vector<1x128xf32>
    %39 = vector.broadcast %38 : vector<1x128xf32> to vector<16x128xf32>
    %40 = arith.addf %37, %39 : vector<16x128xf32>
    %c4 = arith.constant 4 : index
    %c0_19 = arith.constant 0 : index
    %41 = vector.load %arg3[%c4, %c0_19] : memref<16x128xf32, #tpu.memory_space<vmem>>, vector<1x128xf32>
    %c5 = arith.constant 5 : index
    %c0_20 = arith.constant 0 : index
    %42 = vector.load %arg3[%c5, %c0_20] : memref<16x128xf32, #tpu.memory_space<vmem>>, vector<1x128xf32>
    %cst_21 = arith.constant dense<0.000000e+00> : vector<16xf32>
    %43 = vector.multi_reduction <add>, %40, %cst_21 [1] : vector<16x128xf32> to vector<16xf32>
    %44 = vector.shape_cast %43 : vector<16xf32> to vector<16x1xf32>
    %cst_22 = arith.constant 7.812500e-03 : f32
    %45 = vector.broadcast %cst_22 : f32 to vector<16x1xf32>
    %46 = arith.mulf %44, %45 : vector<16x1xf32>
    %47 = vector.broadcast %46 : vector<16x1xf32> to vector<16x128xf32>
    %48 = arith.subf %40, %47 : vector<16x128xf32>
    %49 = arith.mulf %48, %48 : vector<16x128xf32>
    %cst_23 = arith.constant dense<0.000000e+00> : vector<16xf32>
    %50 = vector.multi_reduction <add>, %49, %cst_23 [1] : vector<16x128xf32> to vector<16xf32>
    %51 = vector.shape_cast %50 : vector<16xf32> to vector<16x1xf32>
    %cst_24 = arith.constant 7.812500e-03 : f32
    %52 = vector.broadcast %cst_24 : f32 to vector<16x1xf32>
    %53 = arith.mulf %51, %52 : vector<16x1xf32>
    %cst_25 = arith.constant 9.99999974E-6 : f32
    %54 = vector.broadcast %cst_25 : f32 to vector<16x1xf32>
    %55 = arith.addf %53, %54 : vector<16x1xf32>
    %56 = math.rsqrt %55 : vector<16x1xf32>
    %57 = vector.broadcast %56 : vector<16x1xf32> to vector<16x128xf32>
    %58 = arith.mulf %48, %57 : vector<16x128xf32>
    %59 = vector.broadcast %41 : vector<1x128xf32> to vector<16x128xf32>
    %60 = arith.mulf %58, %59 : vector<16x128xf32>
    %61 = vector.broadcast %42 : vector<1x128xf32> to vector<16x128xf32>
    %62 = arith.addf %60, %61 : vector<16x128xf32>
    %cst_26 = arith.constant 0.000000e+00 : f32
    %63 = vector.broadcast %cst_26 : f32 to vector<16x128xf32>
    %64 = arith.cmpf oge, %62, %63 : vector<16x128xf32>
    %cst_27 = arith.constant 0.00999999977 : f32
    %65 = vector.broadcast %cst_27 : f32 to vector<16x128xf32>
    %66 = arith.mulf %65, %62 : vector<16x128xf32>
    %67 = arith.select %64, %62, %66 : vector<16x128xi1>, vector<16x128xf32>
    %68 = arith.truncf %67 : vector<16x128xf32> to vector<16x128xbf16>
    %c160 = arith.constant 160 : index
    %c0_28 = arith.constant 0 : index
    %69 = vector.load %arg2[%c160, %c0_28] : memref<544x128xbf16, #tpu.memory_space<vmem>>, vector<128x128xbf16>
    %cst_29 = arith.constant dense<0.000000e+00> : vector<16x128xf32>
    %70 = tpu.matmul %68, %69, %cst_29 {dimension_numbers = #tpu.dot_dimension_numbers<[1], [0], [0], [1], [0, 0, 1, 1], [], []>} : vector<16x128xbf16>, vector<128x128xbf16>, vector<16x128xf32> -> vector<16x128xf32>
    %c6 = arith.constant 6 : index
    %c0_30 = arith.constant 0 : index
    %71 = vector.load %arg3[%c6, %c0_30] : memref<16x128xf32, #tpu.memory_space<vmem>>, vector<1x128xf32>
    %72 = vector.broadcast %71 : vector<1x128xf32> to vector<16x128xf32>
    %73 = arith.addf %70, %72 : vector<16x128xf32>
    %c7 = arith.constant 7 : index
    %c0_31 = arith.constant 0 : index
    %74 = vector.load %arg3[%c7, %c0_31] : memref<16x128xf32, #tpu.memory_space<vmem>>, vector<1x128xf32>
    %c8 = arith.constant 8 : index
    %c0_32 = arith.constant 0 : index
    %75 = vector.load %arg3[%c8, %c0_32] : memref<16x128xf32, #tpu.memory_space<vmem>>, vector<1x128xf32>
    %cst_33 = arith.constant dense<0.000000e+00> : vector<16xf32>
    %76 = vector.multi_reduction <add>, %73, %cst_33 [1] : vector<16x128xf32> to vector<16xf32>
    %77 = vector.shape_cast %76 : vector<16xf32> to vector<16x1xf32>
    %cst_34 = arith.constant 1.562500e-02 : f32
    %78 = vector.broadcast %cst_34 : f32 to vector<16x1xf32>
    %79 = arith.mulf %77, %78 : vector<16x1xf32>
    %80 = vector.broadcast %79 : vector<16x1xf32> to vector<16x128xf32>
    %81 = arith.subf %73, %80 : vector<16x128xf32>
    %82 = arith.mulf %81, %81 : vector<16x128xf32>
    %83 = vector.broadcast %1 : vector<1x128xf32> to vector<16x128xf32>
    %84 = arith.mulf %82, %83 : vector<16x128xf32>
    %cst_35 = arith.constant dense<0.000000e+00> : vector<16xf32>
    %85 = vector.multi_reduction <add>, %84, %cst_35 [1] : vector<16x128xf32> to vector<16xf32>
    %86 = vector.shape_cast %85 : vector<16xf32> to vector<16x1xf32>
    %cst_36 = arith.constant 1.562500e-02 : f32
    %87 = vector.broadcast %cst_36 : f32 to vector<16x1xf32>
    %88 = arith.mulf %86, %87 : vector<16x1xf32>
    %cst_37 = arith.constant 9.99999974E-6 : f32
    %89 = vector.broadcast %cst_37 : f32 to vector<16x1xf32>
    %90 = arith.addf %88, %89 : vector<16x1xf32>
    %91 = math.rsqrt %90 : vector<16x1xf32>
    %92 = vector.broadcast %91 : vector<16x1xf32> to vector<16x128xf32>
    %93 = arith.mulf %81, %92 : vector<16x128xf32>
    %94 = vector.broadcast %74 : vector<1x128xf32> to vector<16x128xf32>
    %95 = arith.mulf %93, %94 : vector<16x128xf32>
    %96 = vector.broadcast %75 : vector<1x128xf32> to vector<16x128xf32>
    %97 = arith.addf %95, %96 : vector<16x128xf32>
    %cst_38 = arith.constant 0.000000e+00 : f32
    %98 = vector.broadcast %cst_38 : f32 to vector<16x128xf32>
    %99 = arith.cmpf oge, %97, %98 : vector<16x128xf32>
    %cst_39 = arith.constant 0.00999999977 : f32
    %100 = vector.broadcast %cst_39 : f32 to vector<16x128xf32>
    %101 = arith.mulf %100, %97 : vector<16x128xf32>
    %102 = arith.select %99, %97, %101 : vector<16x128xi1>, vector<16x128xf32>
    %103 = arith.truncf %102 : vector<16x128xf32> to vector<16x128xbf16>
    %c288 = arith.constant 288 : index
    %c0_40 = arith.constant 0 : index
    %104 = vector.load %arg2[%c288, %c0_40] : memref<544x128xbf16, #tpu.memory_space<vmem>>, vector<128x128xbf16>
    %cst_41 = arith.constant dense<0.000000e+00> : vector<16x128xf32>
    %105 = tpu.matmul %103, %104, %cst_41 {dimension_numbers = #tpu.dot_dimension_numbers<[1], [0], [0], [1], [0, 0, 1, 1], [], []>} : vector<16x128xbf16>, vector<128x128xbf16>, vector<16x128xf32> -> vector<16x128xf32>
    %c9 = arith.constant 9 : index
    %c0_42 = arith.constant 0 : index
    %106 = vector.load %arg3[%c9, %c0_42] : memref<16x128xf32, #tpu.memory_space<vmem>>, vector<1x128xf32>
    %107 = vector.broadcast %106 : vector<1x128xf32> to vector<16x128xf32>
    %108 = arith.addf %105, %107 : vector<16x128xf32>
    %c10 = arith.constant 10 : index
    %c0_43 = arith.constant 0 : index
    %109 = vector.load %arg3[%c10, %c0_43] : memref<16x128xf32, #tpu.memory_space<vmem>>, vector<1x128xf32>
    %c11 = arith.constant 11 : index
    %c0_44 = arith.constant 0 : index
    %110 = vector.load %arg3[%c11, %c0_44] : memref<16x128xf32, #tpu.memory_space<vmem>>, vector<1x128xf32>
    %cst_45 = arith.constant dense<0.000000e+00> : vector<16xf32>
    %111 = vector.multi_reduction <add>, %108, %cst_45 [1] : vector<16x128xf32> to vector<16xf32>
    %112 = vector.shape_cast %111 : vector<16xf32> to vector<16x1xf32>
    %cst_46 = arith.constant 3.125000e-02 : f32
    %113 = vector.broadcast %cst_46 : f32 to vector<16x1xf32>
    %114 = arith.mulf %112, %113 : vector<16x1xf32>
    %115 = vector.broadcast %114 : vector<16x1xf32> to vector<16x128xf32>
    %116 = arith.subf %108, %115 : vector<16x128xf32>
    %117 = arith.mulf %116, %116 : vector<16x128xf32>
    %118 = vector.broadcast %2 : vector<1x128xf32> to vector<16x128xf32>
    %119 = arith.mulf %117, %118 : vector<16x128xf32>
    %cst_47 = arith.constant dense<0.000000e+00> : vector<16xf32>
    %120 = vector.multi_reduction <add>, %119, %cst_47 [1] : vector<16x128xf32> to vector<16xf32>
    %121 = vector.shape_cast %120 : vector<16xf32> to vector<16x1xf32>
    %cst_48 = arith.constant 3.125000e-02 : f32
    %122 = vector.broadcast %cst_48 : f32 to vector<16x1xf32>
    %123 = arith.mulf %121, %122 : vector<16x1xf32>
    %cst_49 = arith.constant 9.99999974E-6 : f32
    %124 = vector.broadcast %cst_49 : f32 to vector<16x1xf32>
    %125 = arith.addf %123, %124 : vector<16x1xf32>
    %126 = math.rsqrt %125 : vector<16x1xf32>
    %127 = vector.broadcast %126 : vector<16x1xf32> to vector<16x128xf32>
    %128 = arith.mulf %116, %127 : vector<16x128xf32>
    %129 = vector.broadcast %109 : vector<1x128xf32> to vector<16x128xf32>
    %130 = arith.mulf %128, %129 : vector<16x128xf32>
    %131 = vector.broadcast %110 : vector<1x128xf32> to vector<16x128xf32>
    %132 = arith.addf %130, %131 : vector<16x128xf32>
    %cst_50 = arith.constant 0.000000e+00 : f32
    %133 = vector.broadcast %cst_50 : f32 to vector<16x128xf32>
    %134 = arith.cmpf oge, %132, %133 : vector<16x128xf32>
    %cst_51 = arith.constant 0.00999999977 : f32
    %135 = vector.broadcast %cst_51 : f32 to vector<16x128xf32>
    %136 = arith.mulf %135, %132 : vector<16x128xf32>
    %137 = arith.select %134, %132, %136 : vector<16x128xi1>, vector<16x128xf32>
    %138 = arith.truncf %137 : vector<16x128xf32> to vector<16x128xbf16>
    %c416 = arith.constant 416 : index
    %c0_52 = arith.constant 0 : index
    %139 = vector.load %arg2[%c416, %c0_52] : memref<544x128xbf16, #tpu.memory_space<vmem>>, vector<128x128xbf16>
    %cst_53 = arith.constant dense<0.000000e+00> : vector<16x128xf32>
    %140 = tpu.matmul %138, %139, %cst_53 {dimension_numbers = #tpu.dot_dimension_numbers<[1], [0], [0], [1], [0, 0, 1, 1], [], []>} : vector<16x128xbf16>, vector<128x128xbf16>, vector<16x128xf32> -> vector<16x128xf32>
    %c12 = arith.constant 12 : index
    %c0_54 = arith.constant 0 : index
    %141 = vector.load %arg3[%c12, %c0_54] : memref<16x128xf32, #tpu.memory_space<vmem>>, vector<1x128xf32>
    %142 = vector.broadcast %141 : vector<1x128xf32> to vector<16x128xf32>
    %143 = arith.addf %140, %142 : vector<16x128xf32>
    %144 = vector.extract_strided_slice %143 {offsets = [0, 0], sizes = [16, 8], strides = [1, 1]} : vector<16x128xf32> to vector<16x8xf32>
    %c0_55 = arith.constant 0 : index
    %c0_56 = arith.constant 0 : index
    %145 = vector.load %arg4[%c0_55, %c0_56] : memref<16x8xf32, #tpu.memory_space<vmem>>, vector<16x8xf32>
    tpu.vector_store %arg4[%c0_55, %c0_56], %144 {strides = array<i32>} : memref<16x8xf32, #tpu.memory_space<vmem>>, vector<16x8xf32>,
    return
  }
  func.func @transform_0(%arg0: i32) -> (i32, i32) {
    %c0_i32 = arith.constant 0 : i32
    %c0_i32_0 = arith.constant 0 : i32
    return %arg0, %c0_i32 : i32, i32
  }
  func.func @transform_1(%arg0: i32) -> (i32, i32) {
    %c0_i32 = arith.constant 0 : i32
    %c0_i32_0 = arith.constant 0 : i32
    %c0_i32_1 = arith.constant 0 : i32
    return %c0_i32, %c0_i32_0 : i32, i32
  }
  func.func @transform_2(%arg0: i32) -> (i32, i32) {
    %c0_i32 = arith.constant 0 : i32
    %c0_i32_0 = arith.constant 0 : i32
    %c0_i32_1 = arith.constant 0 : i32
    return %c0_i32, %c0_i32_0 : i32, i32
  }
  func.func @transform_3(%arg0: i32) -> (i32, i32) {
    %c0_i32 = arith.constant 0 : i32
    %c0_i32_0 = arith.constant 0 : i32
    return %arg0, %c0_i32 : i32, i32
  }
}

</mosaic_0001>

<llo_original>
// kernel: tpu_custom_call.1
$region0: #{tpu_custom_call.1}
  #allocation0 [shape = 'u32[]', space=smem, size = 0x4, offset = 0x4, fixed_abs, tag = 'smem constant byte address 0x4 - core index']
  #allocation1 [shape = 'u32[144,128]{1,0:T(1,128)}', space=vmem, size = 0x12000, scoped, tag = 'internal scratch']
  %s0 = inlined_call_operand.hbm [shape: bf16[32,32], index: 0, kind: input, shape index: {}]
  %s1 = inlined_call_operand.hbm [shape: bf16[544,128], index: 1, kind: input, shape index: {}]
  %s2 = inlined_call_operand.hbm [shape: f32[16,128], index: 2, kind: input, shape index: {}]
  %s3 = inlined_call_operand.vmem [shape: f32[32,8], index: 3, kind: output, shape index: {}]
  %s4 = sld [smem:[#allocation0]]
  $region57: #{tpu_custom_call.1} parent=0
    _
  %s6 = ssub.s32 1, %s4
  %s7 = scalar_select 0, %s6, %s4
  $region1: #{tpu_custom_call.1} parent=0
    #allocation2 [shape = 'u8[8192]{0}', space=vmem, size = 0x2000, scoped, tag = 'input window, operand 0']
    #allocation3 [shape = 's32[2]{0}', space=sflag, size = 0x8, scoped, tag = 'scoped memory for tpu_custom_call.1']
    #allocation4 [shape = 'u8[139264]{0}', space=vmem, size = 0x22000, scoped, tag = 'input window, operand 1, single buffered']
    #allocation5 [shape = 's32[1]{0}', space=sflag, size = 0x4, scoped, tag = 'scoped memory for tpu_custom_call.1']
    #allocation6 [shape = 'u8[8192]{0}', space=vmem, size = 0x2000, scoped, tag = 'input window, operand 2, single buffered']
    %8 = vsyncpa [#allocation3], 0
    %s9 = scalar_lea.sflag [#allocation3], 1
    %10 = vsyncpa %s9, 0
    %11 = vsyncpa [#allocation5], 0
    loop: start=0, step=1, limit=4
    $region2: #{tpu_custom_call.1} parent=1 // loop_pre_header
      _
    $region3: #{tpu_custom_call.1} parent=1 // loop_header
      %s13 = sphi 0, %s17
      %p14 = scmp.ge.s32.totalorder %s13, 4
      %s23 = sphi 0, %s25
      %s26 = sphi 0, %s23
      %s27 = sphi 0, %s26
      %s43 = sphi 0, %s27
      %s47 = sphi 0, %s47
      %s49 = sphi 0, %s47
      %s50 = sphi 0, %s49
      %s64 = sphi 0, %s50
      %s68 = sphi 0, %s68
      %s70 = sphi 0, %s68
      %s71 = sphi 0, %s70
      %s85 = sphi 0, %s71
      %s91 = sphi 0, %s93
      %s94 = sphi 0, %s91
      %s95 = sphi 0, %s94
      %s111 = sphi 0, %s95
    $region4: #{tpu_custom_call.1} parent=1 // loop_header_branch
      %16 = sbr.rel (%p14) target = $region8
    $region5: #{tpu_custom_call.1} parent=1 // loop_body
      %s18 = ssub.s32 %s13, 1
      %s19 = ssub.s32 %s13, 2
      %s20 = sadd.s32 %s13, 1
      %s21 = ssub.s32 %s13, %s20
      %p22 = scmp.eq.s32.totalorder %s21, 0
      %s24 = sadd.s32 %s23, 1
      %s25 = scalar_select %p22, %s23, %s24
      %p28 = pneg %p22
      %p29 = scmp.eq.s32.totalorder %s13, 1
      %p30 = por %p28, %p29
      %p31 = scmp.ne.s32.totalorder %s23, %s26
      %p32 = scmp.eq.s32.totalorder %s13, 0
      %p33 = por %p31, %p32
      %p34 = scmp.ne.s32.totalorder %s23, %s26
      %p35 = scmp.eq.s32.totalorder %s18, 1
      %p36 = por %p34, %p35
      %p37 = scmp.ne.s32.totalorder %s26, %s27
      %p38 = scmp.eq.s32.totalorder %s18, 0
      %p39 = por %p37, %p38
      %p40 = scmp.ne.s32.totalorder %s26, %s27
      %p41 = scmp.eq.s32.totalorder %s19, 1
      %p42 = por %p40, %p41
      %p44 = scmp.ne.s32.totalorder %s27, %s43
      %p45 = scmp.eq.s32.totalorder %s19, 0
      %p46 = por %p44, %p45
      %s48 = sadd.s32 %s47, 1
      %p51 = scmp.eq.s32.totalorder %s13, 1
      %p52 = scmp.ne.s32.totalorder %s47, %s49
      %p53 = scmp.eq.s32.totalorder %s13, 0
      %p54 = por %p52, %p53
      %p55 = scmp.ne.s32.totalorder %s47, %s49
      %p56 = scmp.eq.s32.totalorder %s18, 1
      %p57 = por %p55, %p56
      %p58 = scmp.ne.s32.totalorder %s49, %s50
      %p59 = scmp.eq.s32.totalorder %s18, 0
      %p60 = por %p58, %p59
      %p61 = scmp.ne.s32.totalorder %s49, %s50
      %p62 = scmp.eq.s32.totalorder %s19, 1
      %p63 = por %p61, %p62
      %p65 = scmp.ne.s32.totalorder %s50, %s64
      %p66 = scmp.eq.s32.totalorder %s19, 0
      %p67 = por %p65, %p66
      %s69 = sadd.s32 %s68, 1
      %p72 = scmp.eq.s32.totalorder %s13, 1
      %p73 = scmp.ne.s32.totalorder %s68, %s70
      %p74 = scmp.eq.s32.totalorder %s13, 0
      %p75 = por %p73, %p74
      %p76 = scmp.ne.s32.totalorder %s68, %s70
      %p77 = scmp.eq.s32.totalorder %s18, 1
      %p78 = por %p76, %p77
      %p79 = scmp.ne.s32.totalorder %s70, %s71
      %p80 = scmp.eq.s32.totalorder %s18, 0
      %p81 = por %p79, %p80
      %p82 = scmp.ne.s32.totalorder %s70, %s71
      %p83 = scmp.eq.s32.totalorder %s19, 1
      %p84 = por %p82, %p83
      %p86 = scmp.ne.s32.totalorder %s71, %s85
      %p87 = scmp.eq.s32.totalorder %s19, 0
      %p88 = por %p86, %p87
      %s89 = ssub.s32 %s13, %s20
      %p90 = scmp.eq.s32.totalorder %s89, 0
      %s92 = sadd.s32 %s91, 1
      %s93 = scalar_select %p90, %s91, %s92
      %p96 = pneg %p90
      %p97 = scmp.eq.s32.totalorder %s13, 1
      %p98 = por %p96, %p97
      %p99 = scmp.ne.s32.totalorder %s91, %s94
      %p100 = scmp.eq.s32.totalorder %s13, 0
      %p101 = por %p99, %p100
      %p102 = scmp.ne.s32.totalorder %s91, %s94
      %p103 = scmp.eq.s32.totalorder %s18, 1
      %p104 = por %p102, %p103
      %p105 = scmp.ne.s32.totalorder %s94, %s95
      %p106 = scmp.eq.s32.totalorder %s18, 0
      %p107 = por %p105, %p106
      %p108 = scmp.ne.s32.totalorder %s94, %s95
      %p109 = scmp.eq.s32.totalorder %s19, 1
      %p110 = por %p108, %p109
      %p112 = scmp.ne.s32.totalorder %s95, %s111
      %p113 = scmp.eq.s32.totalorder %s19, 0
      %p114 = por %p112, %p113
      %p115 = scmp.le.s32.totalorder 1, %s13
      %p116 = scmp.lt.s32.totalorder %s13, 3
      %p117 = pnand %p115, %p116
      %p118 = pneg %p117
      // Predicated region
      $region9: #{tpu_custom_call.1} parent=5 // pred_check
        _
      $region10: #{tpu_custom_call.1} parent=5 // pred_check_branch
        %120 = sbr.rel (%p117) target = $region12
      $region11: #{tpu_custom_call.1} parent=5 // pred_region
        %s121 = ssub.s32 %s13, 1
        // Predicated region
        $region13: #{tpu_custom_call.1} parent=11 // pred_check
          %p122 = pneg %p60
        $region14: #{tpu_custom_call.1} parent=11 // pred_check_branch
          %124 = sbr.rel (%p122) target = $region16
        $region15: #{tpu_custom_call.1} parent=11 // pred_region
          %s126 = ssub.s32 4352, 4352
          %127 = vsyncadd [#allocation5], %s126
          %s128 = sshll.u32 [#allocation4], 4
          %s129 = int_to_ptr.vmem [resolvable:$true] %s128
          %134 = dma.hbm_to_vmem [thread:$0]  %s1, 4352, %s129, [#allocation5], 64, 64, 4
        $region16: #{tpu_custom_call.1} parent=11 // pred_fallthru
          _
        // Predicated region
        $region17: #{tpu_custom_call.1} parent=11 // pred_check
          %p135 = pneg %p81
        $region18: #{tpu_custom_call.1} parent=11 // pred_check_branch
          %137 = sbr.rel (%p135) target = $region20
        $region19: #{tpu_custom_call.1} parent=11 // pred_region
          %s139 = ssub.s32 256, 256
          %140 = vsyncadd [#allocation5], %s139
          %s141 = sshll.u32 [#allocation6], 4
          %s142 = int_to_ptr.vmem [resolvable:$true] %s141
          %147 = dma.hbm_to_vmem [thread:$0]  %s2, 256, %s142, [#allocation5], 128, 128, 8
        $region20: #{tpu_custom_call.1} parent=11 // pred_fallthru
          _
      $region12: #{tpu_custom_call.1} parent=5 // pred_fallthru
        _
      %p148 = scmp.lt.s32.totalorder %s13, 2
      // Predicated region
      $region21: #{tpu_custom_call.1} parent=5 // pred_check
        %p149 = pneg %p148
      $region22: #{tpu_custom_call.1} parent=5 // pred_check_branch
        %151 = sbr.rel (%p149) target = $region24
      $region23: #{tpu_custom_call.1} parent=5 // pred_region
        // Predicated region
        $region25: #{tpu_custom_call.1} parent=23 // pred_check
          %p152 = pneg %p33
        $region26: #{tpu_custom_call.1} parent=23 // pred_check_branch
          %154 = sbr.rel (%p152) target = $region28
        $region27: #{tpu_custom_call.1} parent=23 // pred_region
          %s155 = sand.u32 %s23, 1
          %s156 = scalar_lea.sflag [#allocation3], %s155
          %s157 = sand.u32 %s23, 1
          %s158 = smul.addr %s157, 8
          %s159 = scalar_lea.vmem [#allocation2], %s158
          %s160 = smul.u32 2, %s13
          %s162 = ssub.s32 128, 128
          %163 = vsyncadd %s156, %s162
          %s164 = smul.addr %s160, 64
          %s165 = scalar_lea.hbm %s0, %s164
          %s166 = sshll.u32 %s159, 4
          %s167 = int_to_ptr.vmem [resolvable:$true] %s166
          %172 = dma.hbm_to_vmem [thread:$0]  %s165, 128, %s167, %s156, 64, 64, 4
        $region28: #{tpu_custom_call.1} parent=23 // pred_fallthru
          _
      $region24: #{tpu_custom_call.1} parent=5 // pred_fallthru
        _
      %p173 = scmp.le.s32.totalorder 1, %s13
      %p174 = scmp.lt.s32.totalorder %s13, 3
      %p175 = pnand %p173, %p174
      %p176 = pneg %p175
      // Predicated region
      $region29: #{tpu_custom_call.1} parent=5 // pred_check
        _
      $region30: #{tpu_custom_call.1} parent=5 // pred_check_branch
        %178 = sbr.rel (%p175) target = $region32
      $region31: #{tpu_custom_call.1} parent=5 // pred_region
        %s179 = ssub.s32 %s13, 1
        %s180 = sand.u32 %s26, 1
        %s181 = scalar_lea.sflag [#allocation3], %s180
        %s182 = sand.u32 %s26, 1
        %s183 = smul.addr %s182, 8
        %s184 = scalar_lea.vmem [#allocation2], %s183
        // Predicated region
        $region33: #{tpu_custom_call.1} parent=31 // pred_check
          %p185 = pneg %p39
        $region34: #{tpu_custom_call.1} parent=31 // pred_check_branch
          %187 = sbr.rel (%p185) target = $region36
        $region35: #{tpu_custom_call.1} parent=31 // pred_region
          %188 = dma.done %s181, 128
        $region36: #{tpu_custom_call.1} parent=31 // pred_fallthru
          _
        // Predicated region
        $region37: #{tpu_custom_call.1} parent=31 // pred_check
          %p189 = pneg %p60
        $region38: #{tpu_custom_call.1} parent=31 // pred_check_branch
          %191 = sbr.rel (%p189) target = $region40
        $region39: #{tpu_custom_call.1} parent=31 // pred_region
          %192 = dma.done [#allocation5], 4352
        $region40: #{tpu_custom_call.1} parent=31 // pred_fallthru
          _
        // Predicated region
        $region41: #{tpu_custom_call.1} parent=31 // pred_check
          %p193 = pneg %p81
        $region42: #{tpu_custom_call.1} parent=31 // pred_check_branch
          %195 = sbr.rel (%p193) target = $region44
        $region43: #{tpu_custom_call.1} parent=31 // pred_region
          %196 = dma.done [#allocation5], 256
        $region44: #{tpu_custom_call.1} parent=31 // pred_fallthru
          _
        %s197 = sand.u32 %s26, 1
        %s198 = scalar_lea.sflag [#allocation3], %s197
        %s199 = sand.u32 %s26, 1
        %s200 = smul.addr %s199, 8
        %s201 = scalar_lea.vmem [#allocation2], %s200
        %p202 = pneg %p39
        %p203 = pneg %p36
        %p204 = pneg %p60
        %p205 = pneg %p57
        %p206 = pneg %p81
        %p207 = pneg %p78
        %p208 = pneg %p107
        %p209 = pneg %p104
        %s210 = smul.u32 2, %s18
        %p211 = scmp.lt.s32.totalorder %s210, 3
        %s212 = scalar_select %p211, %s210, 3
        %s213 = smul.addr %s212, 8
        %s214 = scalar_lea.vmem %s3, %s213
        %s215 = smul.u32 2, %s18
        %s216 = smul.u32 2, %s18
        %p217 = scmp.lt.s32.totalorder %s216, 3
        %s218 = scalar_select %p217, %s216, 3
        %s219 = smul.addr %s218, 8
        %s220 = scalar_lea.vmem %s3, %s219
        %s221 = smul.u32 2, %s18
        %v223 = vld [vmem:[%s184] sm:$0xf]
        %v224 = vld [vmem:[%s184 + $0x4] sm:$0xf]
        %v225 = vld [vmem:[#allocation6 + $0xd] sm:$0x1]
        %v226 = vld [vmem:[#allocation6 + $0xe] sm:$0x1]
        %v227 = vld [vmem:[#allocation4] sm:$0xf]
        %v228 = vld [vmem:[#allocation4 + $0x4] sm:$0xf]
        %v229 = vld [vmem:[#allocation4 + $0x8] sm:$0xf]
        %v230 = vld [vmem:[#allocation4 + $0xc] sm:$0xf]
        %v231 = vld [vmem:[#allocation6] sm:$0x1]
        %v232 = vlaneseq
        %v233 = vshrl.u32 %v232, 7
        %v234 = vsub.s32 0, %v233
        %v235 = vrot.slane %v231, %v234
        %v238 = vunpack.c.l.b16 %v223
        %v239 = vunpack.c.l.b16 %v224
        %v240 = vpack.c.b16 %v239, %v238
        %v245 = vunpack.c.l.b16 %v227
        %v246 = vunpack.c.l.b16 %v228
        %v247 = vunpack.c.l.b16 %v229
        %v248 = vunpack.c.l.b16 %v230
        %v249 = vpack.c.b16 %v246, %v245
        %v250 = vpack.c.b16 %v248, %v247
        %vm253 = vcmask 261120
        %v255 = vsel %vm253, %v240, 0
        %257 = vmatprep.subr.bf16.mxu0 0
        %258 = vmatpush1.bf16.msra.mxu0 0
        %259 = vmatprep.subr.bf16.mxu0 0
        %260 = vmatpush1.bf16.msra.mxu0 0
        %261 = vmatprep.subr.bf16.mxu0 0
        %262 = vmatpush1.bf16.msra.mxu0 0
        %263 = vmatprep.subr.bf16.mxu0 0
        %264 = vmatpush1.bf16.msra.mxu0 0
        %265 = vmatprep.subr.bf16.mxu0 0
        %266 = vmatpush1.bf16.msra.mxu0 0
        %267 = vmatprep.subr.bf16.mxu0 0
        %268 = vmatpush1.bf16.msra.mxu0 0
        %269 = vmatprep.subr.bf16.mxu0 0
        %270 = vmatpush1.bf16.msra.mxu0 %v250
        %271 = vmatprep.subr.bf16.mxu0 0
        %272 = vmatpush1.bf16.msra.mxu0 %v249
        %273 = vmatprep.subr.bf16.mxu0 0
        %274 = vmatpush2.bf16.msra.mxu0 0
        %275 = vmatprep.subr.bf16.mxu0 0
        %276 = vmatpush2.bf16.msra.mxu0 0
        %277 = vmatprep.subr.bf16.mxu0 0
        %278 = vmatpush2.bf16.msra.mxu0 0
        %279 = vmatprep.subr.bf16.mxu0 0
        %280 = vmatpush2.bf16.msra.mxu0 0
        %281 = vmatprep.subr.bf16.mxu0 0
        %282 = vmatpush2.bf16.msra.mxu0 0
        %283 = vmatprep.subr.bf16.mxu0 0
        %284 = vmatpush2.bf16.msra.mxu0 0
        %285 = vmatprep.subr.bf16.mxu0 0
        %286 = vmatpush2.bf16.msra.mxu0 0
        %287 = vmatprep.subr.bf16.mxu0 0
        %288 = vmatpush2.bf16.msra.mxu0 0
        %289 = vmatprep.mubr.bf16.mxu0 0
        %290 = vmatmul.mubr.bf16.gmra.mxu0 %v255
        %v291 = vpop.f32.mrf.mxu0
        %v292 = vadd.f32 %v235, %v291
        %v293 = vpop.f32.mrf.mxu0
        %v294 = vpop.f32.mrf.mxu0
        %v295 = vadd.f32 %v235, %v294
        %v296 = vpop.f32.mrf.mxu0
        %297 = vdwg.mxu0
        %v298 = vld [vmem:[#allocation6 + $0x1] sm:$0x1]
        %v299 = vld [vmem:[#allocation6 + $0x2] sm:$0x1]
        %300 = vadd.xlane.f32.xlu0 %v292
        %v301 = vpop.xlane.xlu0 %300
        %302 = vadd.xlane.f32.xlu0 %v295
        %v303 = vpop.xlane.xlu0 %302
        %v304 = vmul.f32 %v301, 0.0078125
        %v305 = vmul.f32 %v303, 0.0078125
        %v306 = vsub.f32 %v292, %v304
        %v307 = vsub.f32 %v295, %v305
        %v308 = vmul.f32 %v306, %v306
        %v309 = vmul.f32 %v307, %v307
        %310 = vadd.xlane.f32.xlu0 %v308
        %v311 = vpop.xlane.xlu0 %310
        %312 = vadd.xlane.f32.xlu0 %v309
        %v313 = vpop.xlane.xlu0 %312
        %v314 = vmul.f32 %v311, 0.0078125
        %v315 = vmul.f32 %v313, 0.0078125
        %v316 = vadd.f32 %v314, 1e-05
        %v317 = vadd.f32 %v315, 1e-05
        %v318 = vrsqrt.pop %v316
        %v319 = vrsqrt.pop %v317
        %v320 = vmul.f32 %v306, %v318
        %v321 = vmul.f32 %v307, %v319
        %v322 = vlaneseq
        %v323 = vshrl.u32 %v322, 7
        %v324 = vsub.s32 0, %v323
        %v325 = vrot.slane %v298, %v324
        %v326 = vmul.f32 %v320, %v325
        %v327 = vmul.f32 %v321, %v325
        %v328 = vlaneseq
        %v329 = vshrl.u32 %v328, 7
        %v330 = vsub.s32 0, %v329
        %v331 = vrot.slane %v299, %v330
        %v332 = vadd.f32 %v326, %v331
        %v333 = vadd.f32 %v327, %v331
        %vm334 = vcmp.ge.f32.partialorder %v332, 0.0
        %vm335 = vcmp.ge.f32.partialorder %v333, 0.0
        %v336 = vmul.f32 %v332, 0.01
        %v337 = vmul.f32 %v333, 0.01
        %v338 = vsel %vm334, %v332, %v336
        %v339 = vsel %vm335, %v333, %v337
        %v340 = vpack.c.bf16 %v339, %v338
        %v341 = vld [vmem:[#allocation4 + $0x10] sm:$0xf]
        %v342 = vld [vmem:[#allocation4 + $0x14] sm:$0xf]
        %v343 = vld [vmem:[#allocation4 + $0x18] sm:$0xf]
        %v344 = vld [vmem:[#allocation4 + $0x1c] sm:$0xf]
        %v345 = vld [vmem:[#allocation4 + $0x20] sm:$0xf]
        %v346 = vld [vmem:[#allocation4 + $0x24] sm:$0xf]
        %v347 = vld [vmem:[#allocation4 + $0x28] sm:$0xf]
        %v348 = vld [vmem:[#allocation4 + $0x2c] sm:$0xf]
        %v349 = vld [vmem:[#allocation4 + $0x30] sm:$0xf]
        %v350 = vld [vmem:[#allocation4 + $0x34] sm:$0xf]
        %v351 = vld [vmem:[#allocation4 + $0x38] sm:$0xf]
        %v352 = vld [vmem:[#allocation4 + $0x3c] sm:$0xf]
        %v353 = vld [vmem:[#allocation4 + $0x40] sm:$0xf]
        %v354 = vld [vmem:[#allocation4 + $0x44] sm:$0xf]
        %v355 = vld [vmem:[#allocation4 + $0x48] sm:$0xf]
        %v356 = vld [vmem:[#allocation4 + $0x4c] sm:$0xf]
        %v357 = vld [vmem:[#allocation6 + $0x3] sm:$0x1]
        %v358 = vlaneseq
        %v359 = vshrl.u32 %v358, 7
        %v360 = vsub.s32 0, %v359
        %v361 = vrot.slane %v357, %v360
        %v378 = vunpack.c.l.b16 %v341
        %v379 = vunpack.c.l.b16 %v342
        %v380 = vunpack.c.l.b16 %v343
        %v381 = vunpack.c.l.b16 %v344
        %v382 = vunpack.c.l.b16 %v345
        %v383 = vunpack.c.l.b16 %v346
        %v384 = vunpack.c.l.b16 %v347
        %v385 = vunpack.c.l.b16 %v348
        %v386 = vunpack.c.l.b16 %v349
        %v387 = vunpack.c.l.b16 %v350
        %v388 = vunpack.c.l.b16 %v351
        %v389 = vunpack.c.l.b16 %v352
        %v390 = vunpack.c.l.b16 %v353
        %v391 = vunpack.c.l.b16 %v354
        %v392 = vunpack.c.l.b16 %v355
        %v393 = vunpack.c.l.b16 %v356
        %v394 = vpack.c.b16 %v379, %v378
        %v395 = vpack.c.b16 %v381, %v380
        %v396 = vpack.c.b16 %v383, %v382
        %v397 = vpack.c.b16 %v385, %v384
        %v398 = vpack.c.b16 %v387, %v386
        %v399 = vpack.c.b16 %v389, %v388
        %v400 = vpack.c.b16 %v391, %v390
        %v401 = vpack.c.b16 %v393, %v392
        %410 = vmatprep.subr.bf16.mxu0 0
        %411 = vmatpush1.bf16.msra.mxu0 %v401
        %412 = vmatprep.subr.bf16.mxu0 0
        %413 = vmatpush1.bf16.msra.mxu0 %v400
        %414 = vmatprep.subr.bf16.mxu0 0
        %415 = vmatpush1.bf16.msra.mxu0 %v399
        %416 = vmatprep.subr.bf16.mxu0 0
        %417 = vmatpush1.bf16.msra.mxu0 %v398
        %418 = vmatprep.subr.bf16.mxu0 0
        %419 = vmatpush1.bf16.msra.mxu0 %v397
        %420 = vmatprep.subr.bf16.mxu0 0
        %421 = vmatpush1.bf16.msra.mxu0 %v396
        %422 = vmatprep.subr.bf16.mxu0 0
        %423 = vmatpush1.bf16.msra.mxu0 %v395
        %424 = vmatprep.subr.bf16.mxu0 0
        %425 = vmatpush1.bf16.msra.mxu0 %v394
        %426 = vmatprep.subr.bf16.mxu0 0
        %427 = vmatpush2.bf16.msra.mxu0 0
        %428 = vmatprep.subr.bf16.mxu0 0
        %429 = vmatpush2.bf16.msra.mxu0 0
        %430 = vmatprep.subr.bf16.mxu0 0
        %431 = vmatpush2.bf16.msra.mxu0 0
        %432 = vmatprep.subr.bf16.mxu0 0
        %433 = vmatpush2.bf16.msra.mxu0 0
        %434 = vmatprep.subr.bf16.mxu0 0
        %435 = vmatpush2.bf16.msra.mxu0 0
        %436 = vmatprep.subr.bf16.mxu0 0
        %437 = vmatpush2.bf16.msra.mxu0 0
        %438 = vmatprep.subr.bf16.mxu0 0
        %439 = vmatpush2.bf16.msra.mxu0 0
        %440 = vmatprep.subr.bf16.mxu0 0
        %441 = vmatpush2.bf16.msra.mxu0 0
        %442 = vmatprep.mubr.bf16.mxu0 0
        %443 = vmatmul.mubr.bf16.gmra.mxu0 %v340
        %v444 = vpop.f32.mrf.mxu0
        %v445 = vadd.f32 %v361, %v444
        %v446 = vpop.f32.mrf.mxu0
        %v447 = vpop.f32.mrf.mxu0
        %v448 = vadd.f32 %v361, %v447
        %v449 = vpop.f32.mrf.mxu0
        %450 = vdwg.mxu0
        %v451 = vld [vmem:[#allocation6 + $0x4] sm:$0x1]
        %v452 = vld [vmem:[#allocation6 + $0x5] sm:$0x1]
        %453 = vadd.xlane.f32.xlu0 %v445
        %v454 = vpop.xlane.xlu0 %453
        %455 = vadd.xlane.f32.xlu0 %v448
        %v456 = vpop.xlane.xlu0 %455
        %v457 = vmul.f32 %v454, 0.0078125
        %v458 = vmul.f32 %v456, 0.0078125
        %v459 = vsub.f32 %v445, %v457
        %v460 = vsub.f32 %v448, %v458
        %v461 = vmul.f32 %v459, %v459
        %v462 = vmul.f32 %v460, %v460
        %463 = vadd.xlane.f32.xlu0 %v461
        %v464 = vpop.xlane.xlu0 %463
        %465 = vadd.xlane.f32.xlu0 %v462
        %v466 = vpop.xlane.xlu0 %465
        %v467 = vmul.f32 %v464, 0.0078125
        %v468 = vmul.f32 %v466, 0.0078125
        %v469 = vadd.f32 %v467, 1e-05
        %v470 = vadd.f32 %v468, 1e-05
        %v471 = vrsqrt.pop %v469
        %v472 = vrsqrt.pop %v470
        %v473 = vmul.f32 %v459, %v471
        %v474 = vmul.f32 %v460, %v472
        %v475 = vlaneseq
        %v476 = vshrl.u32 %v475, 7
        %v477 = vsub.s32 0, %v476
        %v478 = vrot.slane %v451, %v477
        %v479 = vmul.f32 %v473, %v478
        %v480 = vmul.f32 %v474, %v478
        %v481 = vlaneseq
        %v482 = vshrl.u32 %v481, 7
        %v483 = vsub.s32 0, %v482
        %v484 = vrot.slane %v452, %v483
        %v485 = vadd.f32 %v479, %v484
        %v486 = vadd.f32 %v480, %v484
        %vm487 = vcmp.ge.f32.partialorder %v485, 0.0
        %vm488 = vcmp.ge.f32.partialorder %v486, 0.0
        %v489 = vmul.f32 %v485, 0.01
        %v490 = vmul.f32 %v486, 0.01
        %v491 = vsel %vm487, %v485, %v489
        %v492 = vsel %vm488, %v486, %v490
        %v493 = vpack.c.bf16 %v492, %v491
        %v494 = vld [vmem:[#allocation4 + $0x50] sm:$0xf]
        %v495 = vld [vmem:[#allocation4 + $0x54] sm:$0xf]
        %v496 = vld [vmem:[#allocation4 + $0x58] sm:$0xf]
        %v497 = vld [vmem:[#allocation4 + $0x5c] sm:$0xf]
        %v498 = vld [vmem:[#allocation4 + $0x60] sm:$0xf]
        %v499 = vld [vmem:[#allocation4 + $0x64] sm:$0xf]
        %v500 = vld [vmem:[#allocation4 + $0x68] sm:$0xf]
        %v501 = vld [vmem:[#allocation4 + $0x6c] sm:$0xf]
        %v502 = vld [vmem:[#allocation4 + $0x70] sm:$0xf]
        %v503 = vld [vmem:[#allocation4 + $0x74] sm:$0xf]
        %v504 = vld [vmem:[#allocation4 + $0x78] sm:$0xf]
        %v505 = vld [vmem:[#allocation4 + $0x7c] sm:$0xf]
        %v506 = vld [vmem:[#allocation4 + $0x80] sm:$0xf]
        %v507 = vld [vmem:[#allocation4 + $0x84] sm:$0xf]
        %v508 = vld [vmem:[#allocation4 + $0x88] sm:$0xf]
        %v509 = vld [vmem:[#allocation4 + $0x8c] sm:$0xf]
        %v510 = vld [vmem:[#allocation6 + $0x6] sm:$0x1]
        %v511 = vlaneseq
        %v512 = vshrl.u32 %v511, 7
        %v513 = vsub.s32 0, %v512
        %v514 = vrot.slane %v510, %v513
        %v531 = vunpack.c.l.b16 %v494
        %v532 = vunpack.c.l.b16 %v495
        %v533 = vunpack.c.l.b16 %v496
        %v534 = vunpack.c.l.b16 %v497
        %v535 = vunpack.c.l.b16 %v498
        %v536 = vunpack.c.l.b16 %v499
        %v537 = vunpack.c.l.b16 %v500
        %v538 = vunpack.c.l.b16 %v501
        %v539 = vunpack.c.l.b16 %v502
        %v540 = vunpack.c.l.b16 %v503
        %v541 = vunpack.c.l.b16 %v504
        %v542 = vunpack.c.l.b16 %v505
        %v543 = vunpack.c.l.b16 %v506
        %v544 = vunpack.c.l.b16 %v507
        %v545 = vunpack.c.l.b16 %v508
        %v546 = vunpack.c.l.b16 %v509
        %v547 = vpack.c.b16 %v532, %v531
        %v548 = vpack.c.b16 %v534, %v533
        %v549 = vpack.c.b16 %v536, %v535
        %v550 = vpack.c.b16 %v538, %v537
        %v551 = vpack.c.b16 %v540, %v539
        %v552 = vpack.c.b16 %v542, %v541
        %v553 = vpack.c.b16 %v544, %v543
        %v554 = vpack.c.b16 %v546, %v545
        %563 = vmatprep.subr.bf16.mxu0 0
        %564 = vmatpush1.bf16.msra.mxu0 %v554
        %565 = vmatprep.subr.bf16.mxu0 0
        %566 = vmatpush1.bf16.msra.mxu0 %v553
        %567 = vmatprep.subr.bf16.mxu0 0
        %568 = vmatpush1.bf16.msra.mxu0 %v552
        %569 = vmatprep.subr.bf16.mxu0 0
        %570 = vmatpush1.bf16.msra.mxu0 %v551
        %571 = vmatprep.subr.bf16.mxu0 0
        %572 = vmatpush1.bf16.msra.mxu0 %v550
        %573 = vmatprep.subr.bf16.mxu0 0
        %574 = vmatpush1.bf16.msra.mxu0 %v549
        %575 = vmatprep.subr.bf16.mxu0 0
        %576 = vmatpush1.bf16.msra.mxu0 %v548
        %577 = vmatprep.subr.bf16.mxu0 0
        %578 = vmatpush1.bf16.msra.mxu0 %v547
        %579 = vmatprep.subr.bf16.mxu0 0
        %580 = vmatpush2.bf16.msra.mxu0 0
        %581 = vmatprep.subr.bf16.mxu0 0
        %582 = vmatpush2.bf16.msra.mxu0 0
        %583 = vmatprep.subr.bf16.mxu0 0
        %584 = vmatpush2.bf16.msra.mxu0 0
        %585 = vmatprep.subr.bf16.mxu0 0
        %586 = vmatpush2.bf16.msra.mxu0 0
        %587 = vmatprep.subr.bf16.mxu0 0
        %588 = vmatpush2.bf16.msra.mxu0 0
        %589 = vmatprep.subr.bf16.mxu0 0
        %590 = vmatpush2.bf16.msra.mxu0 0
        %591 = vmatprep.subr.bf16.mxu0 0
        %592 = vmatpush2.bf16.msra.mxu0 0
        %593 = vmatprep.subr.bf16.mxu0 0
        %594 = vmatpush2.bf16.msra.mxu0 0
        %595 = vmatprep.mubr.bf16.mxu0 0
        %596 = vmatmul.mubr.bf16.gmra.mxu0 %v493
        %v597 = vpop.f32.mrf.mxu0
        %v598 = vadd.f32 %v514, %v597
        %v599 = vpop.f32.mrf.mxu0
        %v600 = vpop.f32.mrf.mxu0
        %v601 = vadd.f32 %v514, %v600
        %v602 = vpop.f32.mrf.mxu0
        %603 = vdwg.mxu0
        %v604 = vld [vmem:[#allocation6 + $0x7] sm:$0x1]
        %v605 = vld [vmem:[#allocation6 + $0x8] sm:$0x1]
        %606 = vadd.xlane.f32.xlu0 %v598
        %v607 = vpop.xlane.xlu0 %606
        %608 = vadd.xlane.f32.xlu0 %v601
        %v609 = vpop.xlane.xlu0 %608
        %v610 = vmul.f32 %v607, 0.015625
        %v611 = vmul.f32 %v609, 0.015625
        %v612 = vsub.f32 %v598, %v610
        %v613 = vsub.f32 %v601, %v611
        %v614 = vmul.f32 %v612, %v612
        %v615 = vmul.f32 %v613, %v613
        %v616 = vlaneseq
        %v617 = vshrl.u32 %v616, 7
        %v618 = vsub.s32 0, %v617
        %v619 = vrot.slane %v225, %v618
        %v620 = vmul.f32 %v614, %v619
        %v621 = vmul.f32 %v615, %v619
        %622 = vadd.xlane.f32.xlu0 %v620
        %v623 = vpop.xlane.xlu0 %622
        %624 = vadd.xlane.f32.xlu0 %v621
        %v625 = vpop.xlane.xlu0 %624
        %v626 = vmul.f32 %v623, 0.015625
        %v627 = vmul.f32 %v625, 0.015625
        %v628 = vadd.f32 %v626, 1e-05
        %v629 = vadd.f32 %v627, 1e-05
        %v630 = vrsqrt.pop %v628
        %v631 = vrsqrt.pop %v629
        %v632 = vmul.f32 %v612, %v630
        %v633 = vmul.f32 %v613, %v631
        %v634 = vlaneseq
        %v635 = vshrl.u32 %v634, 7
        %v636 = vsub.s32 0, %v635
        %v637 = vrot.slane %v604, %v636
        %v638 = vmul.f32 %v632, %v637
        %v639 = vmul.f32 %v633, %v637
        %v640 = vlaneseq
        %v641 = vshrl.u32 %v640, 7
        %v642 = vsub.s32 0, %v641
        %v643 = vrot.slane %v605, %v642
        %v644 = vadd.f32 %v638, %v643
        %v645 = vadd.f32 %v639, %v643
        %vm646 = vcmp.ge.f32.partialorder %v644, 0.0
        %vm647 = vcmp.ge.f32.partialorder %v645, 0.0
        %v648 = vmul.f32 %v644, 0.01
        %v649 = vmul.f32 %v645, 0.01
        %v650 = vsel %vm646, %v644, %v648
        %v651 = vsel %vm647, %v645, %v649
        %v652 = vpack.c.bf16 %v651, %v650
        %v653 = vld [vmem:[#allocation4 + $0x90] sm:$0xf]
        %v654 = vld [vmem:[#allocation4 + $0x94] sm:$0xf]
        %v655 = vld [vmem:[#allocation4 + $0x98] sm:$0xf]
        %v656 = vld [vmem:[#allocation4 + $0x9c] sm:$0xf]
        %v657 = vld [vmem:[#allocation4 + $0xa0] sm:$0xf]
        %v658 = vld [vmem:[#allocation4 + $0xa4] sm:$0xf]
        %v659 = vld [vmem:[#allocation4 + $0xa8] sm:$0xf]
        %v660 = vld [vmem:[#allocation4 + $0xac] sm:$0xf]
        %v661 = vld [vmem:[#allocation4 + $0xb0] sm:$0xf]
        %v662 = vld [vmem:[#allocation4 + $0xb4] sm:$0xf]
        %v663 = vld [vmem:[#allocation4 + $0xb8] sm:$0xf]
        %v664 = vld [vmem:[#allocation4 + $0xbc] sm:$0xf]
        %v665 = vld [vmem:[#allocation4 + $0xc0] sm:$0xf]
        %v666 = vld [vmem:[#allocation4 + $0xc4] sm:$0xf]
        %v667 = vld [vmem:[#allocation4 + $0xc8] sm:$0xf]
        %v668 = vld [vmem:[#allocation4 + $0xcc] sm:$0xf]
        %v669 = vld [vmem:[#allocation6 + $0x9] sm:$0x1]
        %v670 = vlaneseq
        %v671 = vshrl.u32 %v670, 7
        %v672 = vsub.s32 0, %v671
        %v673 = vrot.slane %v669, %v672
        %v690 = vunpack.c.l.b16 %v653
        %v691 = vunpack.c.l.b16 %v654
        %v692 = vunpack.c.l.b16 %v655
        %v693 = vunpack.c.l.b16 %v656
        %v694 = vunpack.c.l.b16 %v657
        %v695 = vunpack.c.l.b16 %v658
        %v696 = vunpack.c.l.b16 %v659
        %v697 = vunpack.c.l.b16 %v660
        %v698 = vunpack.c.l.b16 %v661
        %v699 = vunpack.c.l.b16 %v662
        %v700 = vunpack.c.l.b16 %v663
        %v701 = vunpack.c.l.b16 %v664
        %v702 = vunpack.c.l.b16 %v665
        %v703 = vunpack.c.l.b16 %v666
        %v704 = vunpack.c.l.b16 %v667
        %v705 = vunpack.c.l.b16 %v668
        %v706 = vpack.c.b16 %v691, %v690
        %v707 = vpack.c.b16 %v693, %v692
        %v708 = vpack.c.b16 %v695, %v694
        %v709 = vpack.c.b16 %v697, %v696
        %v710 = vpack.c.b16 %v699, %v698
        %v711 = vpack.c.b16 %v701, %v700
        %v712 = vpack.c.b16 %v703, %v702
        %v713 = vpack.c.b16 %v705, %v704
        %722 = vmatprep.subr.bf16.mxu0 0
        %723 = vmatpush1.bf16.msra.mxu0 %v713
        %724 = vmatprep.subr.bf16.mxu0 0
        %725 = vmatpush1.bf16.msra.mxu0 %v712
        %726 = vmatprep.subr.bf16.mxu0 0
        %727 = vmatpush1.bf16.msra.mxu0 %v711
        %728 = vmatprep.subr.bf16.mxu0 0
        %729 = vmatpush1.bf16.msra.mxu0 %v710
        %730 = vmatprep.subr.bf16.mxu0 0
        %731 = vmatpush1.bf16.msra.mxu0 %v709
        %732 = vmatprep.subr.bf16.mxu0 0
        %733 = vmatpush1.bf16.msra.mxu0 %v708
        %734 = vmatprep.subr.bf16.mxu0 0
        %735 = vmatpush1.bf16.msra.mxu0 %v707
        %736 = vmatprep.subr.bf16.mxu0 0
        %737 = vmatpush1.bf16.msra.mxu0 %v706
        %738 = vmatprep.subr.bf16.mxu0 0
        %739 = vmatpush2.bf16.msra.mxu0 0
        %740 = vmatprep.subr.bf16.mxu0 0
        %741 = vmatpush2.bf16.msra.mxu0 0
        %742 = vmatprep.subr.bf16.mxu0 0
        %743 = vmatpush2.bf16.msra.mxu0 0
        %744 = vmatprep.subr.bf16.mxu0 0
        %745 = vmatpush2.bf16.msra.mxu0 0
        %746 = vmatprep.subr.bf16.mxu0 0
        %747 = vmatpush2.bf16.msra.mxu0 0
        %748 = vmatprep.subr.bf16.mxu0 0
        %749 = vmatpush2.bf16.msra.mxu0 0
        %750 = vmatprep.subr.bf16.mxu0 0
        %751 = vmatpush2.bf16.msra.mxu0 0
        %752 = vmatprep.subr.bf16.mxu0 0
        %753 = vmatpush2.bf16.msra.mxu0 0
        %754 = vmatprep.mubr.bf16.mxu0 0
        %755 = vmatmul.mubr.bf16.gmra.mxu0 %v652
        %v756 = vpop.f32.mrf.mxu0
        %v757 = vadd.f32 %v673, %v756
        %v758 = vpop.f32.mrf.mxu0
        %v759 = vpop.f32.mrf.mxu0
        %v760 = vadd.f32 %v673, %v759
        %v761 = vpop.f32.mrf.mxu0
        %762 = vdwg.mxu0
        %v763 = vld [vmem:[#allocation6 + $0xa] sm:$0x1]
        %v764 = vld [vmem:[#allocation6 + $0xb] sm:$0x1]
        %765 = vadd.xlane.f32.xlu0 %v757
        %v766 = vpop.xlane.xlu0 %765
        %767 = vadd.xlane.f32.xlu0 %v760
        %v768 = vpop.xlane.xlu0 %767
        %v769 = vmul.f32 %v766, 0.03125
        %v770 = vmul.f32 %v768, 0.03125
        %v771 = vsub.f32 %v757, %v769
        %v772 = vsub.f32 %v760, %v770
        %v773 = vmul.f32 %v771, %v771
        %v774 = vmul.f32 %v772, %v772
        %v775 = vlaneseq
        %v776 = vshrl.u32 %v775, 7
        %v777 = vsub.s32 0, %v776
        %v778 = vrot.slane %v226, %v777
        %v779 = vmul.f32 %v773, %v778
        %v780 = vmul.f32 %v774, %v778
        %781 = vadd.xlane.f32.xlu0 %v779
        %v782 = vpop.xlane.xlu0 %781
        %783 = vadd.xlane.f32.xlu0 %v780
        %v784 = vpop.xlane.xlu0 %783
        %v785 = vmul.f32 %v782, 0.03125
        %v786 = vmul.f32 %v784, 0.03125
        %v787 = vadd.f32 %v785, 1e-05
        %v788 = vadd.f32 %v786, 1e-05
        %v789 = vrsqrt.pop %v787
        %v790 = vrsqrt.pop %v788
        %v791 = vmul.f32 %v771, %v789
        %v792 = vmul.f32 %v772, %v790
        %v793 = vlaneseq
        %v794 = vshrl.u32 %v793, 7
        %v795 = vsub.s32 0, %v794
        %v796 = vrot.slane %v763, %v795
        %v797 = vmul.f32 %v791, %v796
        %v798 = vmul.f32 %v792, %v796
        %v799 = vlaneseq
        %v800 = vshrl.u32 %v799, 7
        %v801 = vsub.s32 0, %v800
        %v802 = vrot.slane %v764, %v801
        %v803 = vadd.f32 %v797, %v802
        %v804 = vadd.f32 %v798, %v802
        %vm805 = vcmp.ge.f32.partialorder %v803, 0.0
        %vm806 = vcmp.ge.f32.partialorder %v804, 0.0
        %v807 = vmul.f32 %v803, 0.01
        %v808 = vmul.f32 %v804, 0.01
        %v809 = vsel %vm805, %v803, %v807
        %v810 = vsel %vm806, %v804, %v808
        %v811 = vpack.c.bf16 %v810, %v809
        %v812 = vld [vmem:[#allocation4 + $0xd0] sm:$0xf]
        %v813 = vld [vmem:[#allocation4 + $0xd4] sm:$0xf]
        %v814 = vld [vmem:[#allocation4 + $0xd8] sm:$0xf]
        %v815 = vld [vmem:[#allocation4 + $0xdc] sm:$0xf]
        %v816 = vld [vmem:[#allocation4 + $0xe0] sm:$0xf]
        %v817 = vld [vmem:[#allocation4 + $0xe4] sm:$0xf]
        %v818 = vld [vmem:[#allocation4 + $0xe8] sm:$0xf]
        %v819 = vld [vmem:[#allocation4 + $0xec] sm:$0xf]
        %v820 = vld [vmem:[#allocation4 + $0xf0] sm:$0xf]
        %v821 = vld [vmem:[#allocation4 + $0xf4] sm:$0xf]
        %v822 = vld [vmem:[#allocation4 + $0xf8] sm:$0xf]
        %v823 = vld [vmem:[#allocation4 + $0xfc] sm:$0xf]
        %v824 = vld [vmem:[#allocation4 + $0x100] sm:$0xf]
        %v825 = vld [vmem:[#allocation4 + $0x104] sm:$0xf]
        %v826 = vld [vmem:[#allocation4 + $0x108] sm:$0xf]
        %v827 = vld [vmem:[#allocation4 + $0x10c] sm:$0xf]
        %v828 = vld [vmem:[#allocation6 + $0xc] sm:$0x1]
        %v829 = vlaneseq
        %v830 = vshrl.u32 %v829, 7
        %v831 = vsub.s32 0, %v830
        %v832 = vrot.slane %v828, %v831
        %v849 = vunpack.c.l.b16 %v812
        %v850 = vunpack.c.l.b16 %v813
        %v851 = vunpack.c.l.b16 %v814
        %v852 = vunpack.c.l.b16 %v815
        %v853 = vunpack.c.l.b16 %v816
        %v854 = vunpack.c.l.b16 %v817
        %v855 = vunpack.c.l.b16 %v818
        %v856 = vunpack.c.l.b16 %v819
        %v857 = vunpack.c.l.b16 %v820
        %v858 = vunpack.c.l.b16 %v821
        %v859 = vunpack.c.l.b16 %v822
        %v860 = vunpack.c.l.b16 %v823
        %v861 = vunpack.c.l.b16 %v824
        %v862 = vunpack.c.l.b16 %v825
        %v863 = vunpack.c.l.b16 %v826
        %v864 = vunpack.c.l.b16 %v827
        %v865 = vpack.c.b16 %v850, %v849
        %v866 = vpack.c.b16 %v852, %v851
        %v867 = vpack.c.b16 %v854, %v853
        %v868 = vpack.c.b16 %v856, %v855
        %v869 = vpack.c.b16 %v858, %v857
        %v870 = vpack.c.b16 %v860, %v859
        %v871 = vpack.c.b16 %v862, %v861
        %v872 = vpack.c.b16 %v864, %v863
        %881 = vmatprep.subr.bf16.mxu0 0
        %882 = vmatpush1.bf16.msra.mxu0 %v872
        %883 = vmatprep.subr.bf16.mxu0 0
        %884 = vmatpush1.bf16.msra.mxu0 %v871
        %885 = vmatprep.subr.bf16.mxu0 0
        %886 = vmatpush1.bf16.msra.mxu0 %v870
        %887 = vmatprep.subr.bf16.mxu0 0
        %888 = vmatpush1.bf16.msra.mxu0 %v869
        %889 = vmatprep.subr.bf16.mxu0 0
        %890 = vmatpush1.bf16.msra.mxu0 %v868
        %891 = vmatprep.subr.bf16.mxu0 0
        %892 = vmatpush1.bf16.msra.mxu0 %v867
        %893 = vmatprep.subr.bf16.mxu0 0
        %894 = vmatpush1.bf16.msra.mxu0 %v866
        %895 = vmatprep.subr.bf16.mxu0 0
        %896 = vmatpush1.bf16.msra.mxu0 %v865
        %897 = vmatprep.subr.bf16.mxu0 0
        %898 = vmatpush2.bf16.msra.mxu0 0
        %899 = vmatprep.subr.bf16.mxu0 0
        %900 = vmatpush2.bf16.msra.mxu0 0
        %901 = vmatprep.subr.bf16.mxu0 0
        %902 = vmatpush2.bf16.msra.mxu0 0
        %903 = vmatprep.subr.bf16.mxu0 0
        %904 = vmatpush2.bf16.msra.mxu0 0
        %905 = vmatprep.subr.bf16.mxu0 0
        %906 = vmatpush2.bf16.msra.mxu0 0
        %907 = vmatprep.subr.bf16.mxu0 0
        %908 = vmatpush2.bf16.msra.mxu0 0
        %909 = vmatprep.subr.bf16.mxu0 0
        %910 = vmatpush2.bf16.msra.mxu0 0
        %911 = vmatprep.subr.bf16.mxu0 0
        %912 = vmatpush2.bf16.msra.mxu0 0
        %913 = vmatprep.mubr.bf16.mxu0 0
        %914 = vmatmul.mubr.bf16.gmra.mxu0 %v811
        %v915 = vpop.f32.mrf.mxu0
        %v916 = vadd.f32 %v832, %v915
        %v917 = vpop.f32.mrf.mxu0
        %v918 = vpop.f32.mrf.mxu0
        %v919 = vadd.f32 %v832, %v918
        %v920 = vpop.f32.mrf.mxu0
        %921 = vdwg.mxu0
        %vm922 = vcmask 64512
        %923 = vst.msk [vmem:[%s220] sm:$0xff] %vm922, %v916
        %924 = vst.msk [vmem:[%s220 + $0x8] sm:$0xff] %vm922, %v919
        %s925 = smul.u32 2, %s18
        %p926 = scmp.lt.s32.totalorder %s925, 3
        %s927 = scalar_select %p926, %s925, 3
        %s928 = smul.addr %s927, 8
        %s929 = scalar_lea.vmem %s3, %s928
        // Predicated region
        $region45: #{tpu_custom_call.1} parent=31 // pred_check
          %p930 = pneg %p104
        $region46: #{tpu_custom_call.1} parent=31 // pred_check_branch
          %932 = sbr.rel (%p930) target = $region48
        $region47: #{tpu_custom_call.1} parent=31 // pred_region
          %s933 = smul.u32 2, %s18
        $region48: #{tpu_custom_call.1} parent=31 // pred_fallthru
          _
      $region32: #{tpu_custom_call.1} parent=5 // pred_fallthru
        _
      %p934 = scmp.le.s32.totalorder 2, %s13
      // Predicated region
      $region49: #{tpu_custom_call.1} parent=5 // pred_check
        %p935 = pneg %p934
      $region50: #{tpu_custom_call.1} parent=5 // pred_check_branch
        %937 = sbr.rel (%p935) target = $region52
      $region51: #{tpu_custom_call.1} parent=5 // pred_region
        %s938 = ssub.s32 %s13, 2
        // Predicated region
        $region53: #{tpu_custom_call.1} parent=51 // pred_check
          %p939 = pneg %p110
        $region54: #{tpu_custom_call.1} parent=51 // pred_check_branch
          %941 = sbr.rel (%p939) target = $region56
        $region55: #{tpu_custom_call.1} parent=51 // pred_region
          %s942 = smul.u32 2, %s19
          %p943 = scmp.lt.s32.totalorder %s942, 3
          %s944 = scalar_select %p943, %s942, 3
          %s945 = smul.addr %s944, 8
          %s946 = scalar_lea.vmem %s3, %s945
        $region56: #{tpu_custom_call.1} parent=51 // pred_fallthru
          _
      $region52: #{tpu_custom_call.1} parent=5 // pred_fallthru
        _
    $region6: #{tpu_custom_call.1} parent=1 // loop_footer
      %s17 = sadd.s32 1, %s13
    $region7: #{tpu_custom_call.1} parent=1 // loop_footer_branch
      %12 = sbr.rel target = $region3
    $region8: #{tpu_custom_call.1} parent=1 // loop_exit
      _
    %947 = vsyncpa [#allocation3], 1
    %s948 = scalar_lea.sflag [#allocation3], 1
    %949 = vsyncpa %s948, 1
    %950 = vsyncpa [#allocation5], 1

</llo_original>
